<compile_context>
chip_gen: v7x
topology: tpu7x:2x2x1
jax: 0.10.0
libtpu: 0.0.40
codegen_flags: <defaults>
</compile_context>

<pallas_src>
import jax
import jax.numpy as jnp
from jax import lax
from jax.experimental import pallas as pl
from jax.experimental.pallas import tpu as pltpu

DIM = 192
LQ = 4
LK = 6
BATCH = 1
SCALE = DIM ** (-0.5)


def attn_kernel(q_ref, k_ref, v_ref, w_ref, b_ref, o_ref):
    # q_ref: (LQ, D); k_ref / v_ref: (LK, D)
    # w_ref: (3, D, D) = stack([Wq^T * scale, Wk^T, Wv^T])   (prepared once)
    # b_ref: (3, 1, D) = stack([bq * scale,  bk,   bv  ])
    # o_ref: (LQ, D)
    #
    # Three tiny MXU dots; leading-axis slices of w_ref / b_ref are free views.
    q = jnp.dot(q_ref[...], w_ref[0], preferred_element_type=jnp.float32) + b_ref[0]
    k = jnp.dot(k_ref[...], w_ref[1], preferred_element_type=jnp.float32) + b_ref[1]
    v = jnp.dot(v_ref[...], w_ref[2], preferred_element_type=jnp.float32) + b_ref[2]

    # Scores (LQ, LK): contract last dims directly (no materialized k.T).
    # SCALE is already folded into q via the prepped weights.
    qk = lax.dot_general(q, k, (((1,), (1,)), ((), ())),
                         preferred_element_type=jnp.float32)

    # Numerically stable softmax with an exact divide (denom is only (LQ, 1)).
    m = jnp.max(qk, axis=-1, keepdims=True)
    e = jnp.exp(qk - m)
    denom = jnp.sum(e, axis=-1, keepdims=True)

    # TODO(synk): nn.Dropout is treated as identity (eval-mode semantics);
    # stochastic training-mode dropout is not reproduced.
    acc = jnp.dot(e, v, preferred_element_type=jnp.float32)
    o_ref[...] = (acc / denom).astype(o_ref.dtype)


def prepare_params(wq, bq, wk, bk, wv, bv):
    """One-time parameter prep (call once, reuse across forward calls).

    Torch Linear stores W as (out, in); stack the transposed weights into a
    (3, D, D) tensor and biases into (3, 1, D).  The softmax scale D**-0.5 is
    folded into the query projection (weight AND bias) so the kernel never
    multiplies by it.
    """
    wq_t = jnp.asarray(wq, jnp.float32).T * SCALE
    wk_t = jnp.asarray(wk, jnp.float32).T
    wv_t = jnp.asarray(wv, jnp.float32).T
    w_big = jnp.stack([wq_t, wk_t, wv_t], axis=0)                    # (3, D, D)

    bq_s = (jnp.asarray(bq, jnp.float32) * SCALE).reshape(1, DIM)
    b_big = jnp.stack([bq_s,
                       jnp.asarray(bk, jnp.float32).reshape(1, DIM),
                       jnp.asarray(bv, jnp.float32).reshape(1, DIM)], axis=0)  # (3, 1, D)
    return w_big, b_big


@jax.jit
def attention_forward(query, key, value, w_big, b_big):
    """query: (B, LQ, D); key/value: (B, LK, D); w_big: (3, D, D); b_big: (3, 1, D)."""
    B, Lq, D = query.shape
    _, Lk, _ = key.shape

    seq_spec_q = pl.BlockSpec((pl.Squeezed(), Lq, D), lambda b: (b, 0, 0))
    seq_spec_k = pl.BlockSpec((pl.Squeezed(), Lk, D), lambda b: (b, 0, 0))
    w_spec = pl.BlockSpec((3, D, D), lambda b: (0, 0, 0))
    b_spec = pl.BlockSpec((3, 1, D), lambda b: (0, 0, 0))

    return pl.pallas_call(
        attn_kernel,
        out_shape=jax.ShapeDtypeStruct((B, Lq, D), jnp.float32),
        grid_spec=pltpu.PrefetchScalarGridSpec(
            num_scalar_prefetch=0,
            grid=(B,),
            in_specs=[
                seq_spec_q,      # query
                seq_spec_k,      # key
                seq_spec_k,      # value
                w_spec,          # stacked [Wq^T*scale, Wk^T, Wv^T]
                b_spec,          # stacked [bq*scale,  bk,   bv ]
            ],
            out_specs=pl.BlockSpec((pl.Squeezed(), Lq, D), lambda b: (b, 0, 0)),
        ),
        compiler_params=pltpu.CompilerParams(
            dimension_semantics=("parallel",)),
    )(query, key, value, w_big, b_big)


def reference_forward(query, key, value, wq, bq, wk, bk, wv, bv):
    q = jnp.einsum("bld,od->blo", query, wq) + bq
    k = jnp.einsum("bld,od->blo", key, wk) + bk
    v = jnp.einsum("bld,od->blo", value, wv) + bv
    qk = jnp.einsum("bqd,bkd->bqk", q, k) * SCALE
    p = jax.nn.softmax(qk, axis=-1)
    return jnp.einsum("bqk,bkd->bqd", p, v)


if __name__ == "__main__":
    root = jax.random.PRNGKey(0)
    keys = jax.random.split(root, 9)

    query = jax.random.normal(keys[0], (BATCH, LQ, DIM), dtype=jnp.float32)
    key_in = jax.random.normal(keys[1], (BATCH, LK, DIM), dtype=jnp.float32)
    value = jax.random.normal(keys[2], (BATCH, LK, DIM), dtype=jnp.float32)

    # Deterministic Linear params (torch convention: W is (out, in)).
    limit = 1.0 / (DIM ** 0.5)
    wq = jax.random.uniform(keys[3], (DIM, DIM), minval=-limit, maxval=limit)
    bq = jax.random.uniform(keys[4], (DIM,), minval=-limit, maxval=limit)
    wk = jax.random.uniform(keys[5], (DIM, DIM), minval=-limit, maxval=limit)
    bk = jax.random.uniform(keys[6], (DIM,), minval=-limit, maxval=limit)
    wv = jax.random.uniform(keys[7], (DIM, DIM), minval=-limit, maxval=limit)
    bv = jax.random.uniform(keys[8], (DIM,), minval=-limit, maxval=limit)

    # One-time param prep (hoisted out of the per-call path).
    w_big, b_big = prepare_params(wq, bq, wk, bk, wv, bv)
    w_big = jax.block_until_ready(w_big)

    out = attention_forward(query, key_in, value, w_big, b_big)
    out = jax.block_until_ready(out)

    ref = reference_forward(query, key_in, value, wq, bq, wk, bk, wv, bv)
    assert out.shape == (BATCH, LQ, DIM)
    # Exact divide in the softmax epilogue -> tolerance restored to 1e-4.
    assert jnp.allclose(out, ref, atol=1e-4, rtol=1e-4)

    print("KERNEL_OK")
</pallas_src>

<mosaic_0001>
module attributes {stable_mosaic.version = 11 : i64} {
  func.func @attn_kernel(%arg0: i32, %arg1: memref<1x4x192xf32, #tpu.memory_space<vmem>>, %arg2: memref<1x6x192xf32, #tpu.memory_space<vmem>>, %arg3: memref<1x6x192xf32, #tpu.memory_space<vmem>>, %arg4: memref<3x192x192xf32, #tpu.memory_space<vmem>>, %arg5: memref<3x1x192xf32, #tpu.memory_space<vmem>>, %arg6: memref<1x4x192xf32, #tpu.memory_space<vmem>>) attributes {dimension_semantics = [#tpu.dimension_semantics<parallel>], iteration_bounds = array<i64: 1>, scalar_prefetch = 0 : i64, scratch_operands = 0 : i64, tpu.core_type = #tpu.core_type<tc>, window_params = [{transform_indices = @transform_0, window_bounds = array<i64: 1, 4, 192>}, {transform_indices = @transform_1, window_bounds = array<i64: 1, 6, 192>}, {transform_indices = @transform_2, window_bounds = array<i64: 1, 6, 192>}, {pipeline_mode = #tpu.pipeline_mode<synchronous>, transform_indices = @transform_3, window_bounds = array<i64: 3, 192, 192>}, {pipeline_mode = #tpu.pipeline_mode<synchronous>, transform_indices = @transform_4, window_bounds = array<i64: 3, 1, 192>}, {transform_indices = @transform_5, window_bounds = array<i64: 1, 4, 192>}]} {
    %c0 = arith.constant 0 : index
    %c0_0 = arith.constant 0 : index
    %c0_1 = arith.constant 0 : index
    %0 = vector.load %arg1[%c0, %c0_0, %c0_1] : memref<1x4x192xf32, #tpu.memory_space<vmem>>, vector<1x4x192xf32>
    %1 = vector.shape_cast %0 : vector<1x4x192xf32> to vector<4x192xf32>
    %c0_2 = arith.constant 0 : index
    %c0_3 = arith.constant 0 : index
    %c0_4 = arith.constant 0 : index
    %2 = vector.load %arg4[%c0_2, %c0_3, %c0_4] : memref<3x192x192xf32, #tpu.memory_space<vmem>>, vector<1x192x192xf32>
    %3 = vector.shape_cast %2 : vector<1x192x192xf32> to vector<192x192xf32>
    %cst = arith.constant dense<0.000000e+00> : vector<4x192xf32>
    %4 = tpu.matmul %1, %3, %cst {dimension_numbers = #tpu.dot_dimension_numbers<[1], [0], [0], [1], [0, 0, 1, 1], [], []>} : vector<4x192xf32>, vector<192x192xf32>, vector<4x192xf32> -> vector<4x192xf32>
    %c0_5 = arith.constant 0 : index
    %c0_6 = arith.constant 0 : index
    %c0_7 = arith.constant 0 : index
    %5 = vector.load %arg5[%c0_5, %c0_6, %c0_7] : memref<3x1x192xf32, #tpu.memory_space<vmem>>, vector<1x1x192xf32>
    %6 = vector.shape_cast %5 : vector<1x1x192xf32> to vector<1x192xf32>
    %7 = vector.broadcast %6 : vector<1x192xf32> to vector<4x192xf32>
    %8 = arith.addf %4, %7 : vector<4x192xf32>
    %c0_8 = arith.constant 0 : index
    %c0_9 = arith.constant 0 : index
    %c0_10 = arith.constant 0 : index
    %9 = vector.load %arg2[%c0_8, %c0_9, %c0_10] : memref<1x6x192xf32, #tpu.memory_space<vmem>>, vector<1x6x192xf32>
    %10 = vector.shape_cast %9 : vector<1x6x192xf32> to vector<6x192xf32>
    %c1 = arith.constant 1 : index
    %c0_11 = arith.constant 0 : index
    %c0_12 = arith.constant 0 : index
    %11 = vector.load %arg4[%c1, %c0_11, %c0_12] : memref<3x192x192xf32, #tpu.memory_space<vmem>>, vector<1x192x192xf32>
    %12 = vector.shape_cast %11 : vector<1x192x192xf32> to vector<192x192xf32>
    %cst_13 = arith.constant dense<0.000000e+00> : vector<6x192xf32>
    %13 = tpu.matmul %10, %12, %cst_13 {dimension_numbers = #tpu.dot_dimension_numbers<[1], [0], [0], [1], [0, 0, 1, 1], [], []>} : vector<6x192xf32>, vector<192x192xf32>, vector<6x192xf32> -> vector<6x192xf32>
    %c1_14 = arith.constant 1 : index
    %c0_15 = arith.constant 0 : index
    %c0_16 = arith.constant 0 : index
    %14 = vector.load %arg5[%c1_14, %c0_15, %c0_16] : memref<3x1x192xf32, #tpu.memory_space<vmem>>, vector<1x1x192xf32>
    %15 = vector.shape_cast %14 : vector<1x1x192xf32> to vector<1x192xf32>
    %16 = vector.broadcast %15 : vector<1x192xf32> to vector<6x192xf32>
    %17 = arith.addf %13, %16 : vector<6x192xf32>
    %c0_17 = arith.constant 0 : index
    %c0_18 = arith.constant 0 : index
    %c0_19 = arith.constant 0 : index
    %18 = vector.load %arg3[%c0_17, %c0_18, %c0_19] : memref<1x6x192xf32, #tpu.memory_space<vmem>>, vector<1x6x192xf32>
    %19 = vector.shape_cast %18 : vector<1x6x192xf32> to vector<6x192xf32>
    %c2 = arith.constant 2 : index
    %c0_20 = arith.constant 0 : index
    %c0_21 = arith.constant 0 : index
    %20 = vector.load %arg4[%c2, %c0_20, %c0_21] : memref<3x192x192xf32, #tpu.memory_space<vmem>>, vector<1x192x192xf32>
    %21 = vector.shape_cast %20 : vector<1x192x192xf32> to vector<192x192xf32>
    %cst_22 = arith.constant dense<0.000000e+00> : vector<6x192xf32>
    %22 = tpu.matmul %19, %21, %cst_22 {dimension_numbers = #tpu.dot_dimension_numbers<[1], [0], [0], [1], [0, 0, 1, 1], [], []>} : vector<6x192xf32>, vector<192x192xf32>, vector<6x192xf32> -> vector<6x192xf32>
    %c2_23 = arith.constant 2 : index
    %c0_24 = arith.constant 0 : index
    %c0_25 = arith.constant 0 : index
    %23 = vector.load %arg5[%c2_23, %c0_24, %c0_25] : memref<3x1x192xf32, #tpu.memory_space<vmem>>, vector<1x1x192xf32>
    %24 = vector.shape_cast %23 : vector<1x1x192xf32> to vector<1x192xf32>
    %25 = vector.broadcast %24 : vector<1x192xf32> to vector<6x192xf32>
    %26 = arith.addf %22, %25 : vector<6x192xf32>
    %cst_26 = arith.constant dense<0.000000e+00> : vector<4x6xf32>
    %27 = tpu.matmul %8, %17, %cst_26 {dimension_numbers = #tpu.dot_dimension_numbers<[1], [1], [0], [0], [0, 0, 1, 0], [], []>} : vector<4x192xf32>, vector<6x192xf32>, vector<4x6xf32> -> vector<4x6xf32>
    %cst_27 = arith.constant dense<0xFF800000> : vector<4xf32>
    %28 = vector.multi_reduction <maximumf>, %27, %cst_27 [1] : vector<4x6xf32> to vector<4xf32>
    %29 = vector.shape_cast %28 : vector<4xf32> to vector<4x1xf32>
    %30 = vector.broadcast %29 : vector<4x1xf32> to vector<4x6xf32>
    %31 = arith.subf %27, %30 : vector<4x6xf32>
    %32 = math.exp %31 : vector<4x6xf32>
    %cst_28 = arith.constant dense<0.000000e+00> : vector<4xf32>
    %33 = vector.multi_reduction <add>, %32, %cst_28 [1] : vector<4x6xf32> to vector<4xf32>
    %34 = vector.shape_cast %33 : vector<4xf32> to vector<4x1xf32>
    %cst_29 = arith.constant dense<0.000000e+00> : vector<4x192xf32>
    %35 = tpu.matmul %32, %26, %cst_29 {dimension_numbers = #tpu.dot_dimension_numbers<[1], [0], [0], [1], [0, 0, 1, 1], [], []>} : vector<4x6xf32>, vector<6x192xf32>, vector<4x192xf32> -> vector<4x192xf32>
    %36 = vector.broadcast %34 : vector<4x1xf32> to vector<4x192xf32>
    %37 = arith.divf %35, %36 : vector<4x192xf32>
    %c0_30 = arith.constant 0 : index
    %c0_31 = arith.constant 0 : index
    %c0_32 = arith.constant 0 : index
    %38 = vector.load %arg6[%c0_30, %c0_31, %c0_32] : memref<1x4x192xf32, #tpu.memory_space<vmem>>, vector<1x4x192xf32>
    %39 = vector.shape_cast %38 : vector<1x4x192xf32> to vector<4x192xf32>
    %40 = vector.shape_cast %37 : vector<4x192xf32> to vector<1x4x192xf32>
    tpu.vector_store %arg6[%c0_30, %c0_31, %c0_32], %40 {strides = array<i32>} : memref<1x4x192xf32, #tpu.memory_space<vmem>>, vector<1x4x192xf32>,
    return
  }
  func.func @transform_0(%arg0: i32) -> (i32, i32, i32) {
    %c0_i32 = arith.constant 0 : i32
    %c0_i32_0 = arith.constant 0 : i32
    %c0_i32_1 = arith.constant 0 : i32
    return %arg0, %c0_i32, %c0_i32_0 : i32, i32, i32
  }
  func.func @transform_1(%arg0: i32) -> (i32, i32, i32) {
    %c0_i32 = arith.constant 0 : i32
    %c0_i32_0 = arith.constant 0 : i32
    %c0_i32_1 = arith.constant 0 : i32
    return %arg0, %c0_i32, %c0_i32_0 : i32, i32, i32
  }
  func.func @transform_2(%arg0: i32) -> (i32, i32, i32) {
    %c0_i32 = arith.constant 0 : i32
    %c0_i32_0 = arith.constant 0 : i32
    %c0_i32_1 = arith.constant 0 : i32
    return %arg0, %c0_i32, %c0_i32_0 : i32, i32, i32
  }
  func.func @transform_3(%arg0: i32) -> (i32, i32, i32) {
    %c0_i32 = arith.constant 0 : i32
    %c0_i32_0 = arith.constant 0 : i32
    %c0_i32_1 = arith.constant 0 : i32
    %c0_i32_2 = arith.constant 0 : i32
    return %c0_i32, %c0_i32_0, %c0_i32_1 : i32, i32, i32
  }
  func.func @transform_4(%arg0: i32) -> (i32, i32, i32) {
    %c0_i32 = arith.constant 0 : i32
    %c0_i32_0 = arith.constant 0 : i32
    %c0_i32_1 = arith.constant 0 : i32
    %c0_i32_2 = arith.constant 0 : i32
    return %c0_i32, %c0_i32_0, %c0_i32_1 : i32, i32, i32
  }
  func.func @transform_5(%arg0: i32) -> (i32, i32, i32) {
    %c0_i32 = arith.constant 0 : i32
    %c0_i32_0 = arith.constant 0 : i32
    %c0_i32_1 = arith.constant 0 : i32
    return %arg0, %c0_i32, %c0_i32_0 : i32, i32, i32
  }
}

</mosaic_0001>

<llo_original>
// kernel: attention_forward.1
$region0: #{attention_forward.1}
  #allocation0 [shape = 'u32[]', space=smem, size = 0x4, offset = 0x4, fixed_abs, tag = 'smem constant byte address 0x4 - core index']
  #allocation1 [shape = 'u32[144,128]{1,0:T(1,128)}', space=vmem, size = 0x12000, scoped, tag = 'internal scratch']
  %s0 = inlined_call_operand.vmem [shape: f32[1,4,192], index: 0, kind: input, shape index: {}]
  %s1 = inlined_call_operand.vmem [shape: f32[1,6,192], index: 1, kind: input, shape index: {}]
  %s2 = inlined_call_operand.vmem [shape: f32[1,6,192], index: 2, kind: input, shape index: {}]
  %s3 = inlined_call_operand.hbm [shape: f32[3,192,192], index: 3, kind: input, shape index: {}]
  %s4 = inlined_call_operand.vmem [shape: f32[3,1,192], index: 4, kind: input, shape index: {}]
  %s5 = inlined_call_operand.hbm [shape: f32[1,4,192], index: 5, kind: output, shape index: {}]
  %s6 = sld [smem:[#allocation0]]
  $region34: #{attention_forward.1} parent=0
    _
  %s8 = ssub.s32 1, %s6
  %s9 = scalar_select 0, %s8, %s6
  $region1: #{attention_forward.1} parent=0
    #allocation2 [shape = 'u8[589824]{0}', space=vmem, size = 0x90000, scoped, tag = 'input window, operand 3, single buffered']
    #allocation3 [shape = 's32[1]{0}', space=sflag, size = 0x4, scoped, tag = 'scoped memory for attention_forward.1']
    #allocation4 [shape = 's32[1]{0}', space=sflag, size = 0x4, scoped, tag = 'scoped memory for attention_forward.1']
    #allocation5 [shape = 'u8[4096]{0}', space=vmem, size = 0x1000, scoped, tag = 'output window, operand 0, single buffered']
    %10 = vsyncpa [#allocation3], 0
    %11 = vsyncpa [#allocation4], 0
    // Predicated region
    $region2: #{attention_forward.1} parent=1 // pred_check
      _
    $region3: #{attention_forward.1} parent=1 // pred_check_branch
      %13 = sbr.rel (0) target = $region5
    $region4: #{attention_forward.1} parent=1 // pred_region
      _
    $region5: #{attention_forward.1} parent=1 // pred_fallthru
      _
    // Predicated region
    $region6: #{attention_forward.1} parent=1 // pred_check
      _
    $region7: #{attention_forward.1} parent=1 // pred_check_branch
      %15 = sbr.rel (0) target = $region9
    $region8: #{attention_forward.1} parent=1 // pred_region
      _
    $region9: #{attention_forward.1} parent=1 // pred_fallthru
      _
    // Predicated region
    $region10: #{attention_forward.1} parent=1 // pred_check
      _
    $region11: #{attention_forward.1} parent=1 // pred_check_branch
      %17 = sbr.rel (0) target = $region13
    $region12: #{attention_forward.1} parent=1 // pred_region
      _
    $region13: #{attention_forward.1} parent=1 // pred_fallthru
      _
    // Predicated region
    $region14: #{attention_forward.1} parent=1 // pred_check
      _
    $region15: #{attention_forward.1} parent=1 // pred_check_branch
      %19 = sbr.rel (0) target = $region17
    $region16: #{attention_forward.1} parent=1 // pred_region
      %s21 = ssub.s32 18432, 18432
      %22 = vsyncadd [#allocation3], %s21
      %s23 = sshll.u32 [#allocation2], 4
      %s24 = int_to_ptr.vmem [resolvable:$true] %s23
      %29 = dma.hbm_to_vmem [thread:$0]  %s3, 18432, %s24, [#allocation3], 256, 256, 16
    $region17: #{attention_forward.1} parent=1 // pred_fallthru
      _
    // Predicated region
    $region18: #{attention_forward.1} parent=1 // pred_check
      _
    $region19: #{attention_forward.1} parent=1 // pred_check_branch
      %31 = sbr.rel (0) target = $region21
    $region20: #{attention_forward.1} parent=1 // pred_region
      _
    $region21: #{attention_forward.1} parent=1 // pred_fallthru
      _
    // Predicated region
    $region22: #{attention_forward.1} parent=1 // pred_check
      _
    $region23: #{attention_forward.1} parent=1 // pred_check_branch
      %33 = sbr.rel (0) target = $region25
    $region24: #{attention_forward.1} parent=1 // pred_region
      %34 = dma.done [#allocation3], 18432
    $region25: #{attention_forward.1} parent=1 // pred_fallthru
      _
    %v35 = vld [vmem:[%s0] sm:$0xff]
    %v36 = vld [vmem:[#allocation2] sm:$0xff]
    %v37 = vld [vmem:[#allocation2 + $0x8] sm:$0xff]
    %v38 = vld [vmem:[#allocation2 + $0x10] sm:$0xff]
    %v39 = vld [vmem:[#allocation2 + $0x18] sm:$0xff]
    %v40 = vld [vmem:[#allocation2 + $0x20] sm:$0xff]
    %v41 = vld [vmem:[#allocation2 + $0x28] sm:$0xff]
    %v42 = vld [vmem:[#allocation2 + $0x30] sm:$0xff]
    %v43 = vld [vmem:[#allocation2 + $0x38] sm:$0xff]
    %v44 = vld [vmem:[#allocation2 + $0x40] sm:$0xff]
    %v45 = vld [vmem:[#allocation2 + $0x48] sm:$0xff]
    %v46 = vld [vmem:[#allocation2 + $0x50] sm:$0xff]
    %v47 = vld [vmem:[#allocation2 + $0x58] sm:$0xff]
    %v48 = vld [vmem:[#allocation2 + $0x60] sm:$0xff]
    %v49 = vld [vmem:[#allocation2 + $0x68] sm:$0xff]
    %v50 = vld [vmem:[#allocation2 + $0x70] sm:$0xff]
    %v51 = vld [vmem:[#allocation2 + $0x78] sm:$0xff]
    %v52 = vld [vmem:[#allocation2 + $0x80] sm:$0xff]
    %v53 = vld [vmem:[#allocation2 + $0x88] sm:$0xff]
    %v54 = vld [vmem:[#allocation2 + $0x90] sm:$0xff]
    %v55 = vld [vmem:[#allocation2 + $0x98] sm:$0xff]
    %v56 = vld [vmem:[#allocation2 + $0xa0] sm:$0xff]
    %v57 = vld [vmem:[#allocation2 + $0xa8] sm:$0xff]
    %v58 = vld [vmem:[#allocation2 + $0xb0] sm:$0xff]
    %v59 = vld [vmem:[#allocation2 + $0xb8] sm:$0xff]
    %v60 = vld [vmem:[#allocation2 + $0xc0] sm:$0xff]
    %v61 = vld [vmem:[#allocation2 + $0xc8] sm:$0xff]
    %v62 = vld [vmem:[#allocation2 + $0xd0] sm:$0xff]
    %v63 = vld [vmem:[#allocation2 + $0xd8] sm:$0xff]
    %v64 = vld [vmem:[#allocation2 + $0xe0] sm:$0xff]
    %v65 = vld [vmem:[#allocation2 + $0xe8] sm:$0xff]
    %v66 = vld [vmem:[#allocation2 + $0xf0] sm:$0xff]
    %v67 = vld [vmem:[#allocation2 + $0xf8] sm:$0xff]
    %v68 = vld [vmem:[#allocation2 + $0x100] sm:$0xff]
    %v69 = vld [vmem:[#allocation2 + $0x108] sm:$0xff]
    %v70 = vld [vmem:[#allocation2 + $0x110] sm:$0xff]
    %v71 = vld [vmem:[#allocation2 + $0x118] sm:$0xff]
    %v72 = vld [vmem:[#allocation2 + $0x120] sm:$0xff]
    %v73 = vld [vmem:[#allocation2 + $0x128] sm:$0xff]
    %v74 = vld [vmem:[#allocation2 + $0x130] sm:$0xff]
    %v75 = vld [vmem:[#allocation2 + $0x138] sm:$0xff]
    %v76 = vld [vmem:[#allocation2 + $0x140] sm:$0xff]
    %v77 = vld [vmem:[#allocation2 + $0x148] sm:$0xff]
    %v78 = vld [vmem:[#allocation2 + $0x150] sm:$0xff]
    %v79 = vld [vmem:[#allocation2 + $0x158] sm:$0xff]
    %v80 = vld [vmem:[#allocation2 + $0x160] sm:$0xff]
    %v81 = vld [vmem:[#allocation2 + $0x168] sm:$0xff]
    %v82 = vld [vmem:[#allocation2 + $0x170] sm:$0xff]
    %v83 = vld [vmem:[#allocation2 + $0x178] sm:$0xff]
    %v84 = vld [vmem:[%s4] sm:$0x3]
    %v86 = vlaneseq
    %v87 = vshrl.u32 %v86, 7
    %v88 = vsub.s32 0, %v87
    %v89 = vrot.slane %v84, %v88
    %v90 = vlaneseq
    %v91 = vshrl.u32 %v90, 7
    %v92 = vsub.s32 1, %v91
    %v93 = vrot.slane %v84, %v92
    %v97 = vcombine.high %v35, %v35
    %vm98 = vcmask 523264
    %v99 = vsel %vm98, %v97, 0
    %101 = vmatprep.subr.mxu0 %v37
    %102 = vmatpush1.msra.mxu0 %v36
    %103 = vmatprep.subr.mxu0 %v39
    %104 = vmatpush1.msra.mxu0 %v38
    %105 = vmatprep.subr.mxu0 %v41
    %106 = vmatpush1.msra.mxu0 %v40
    %107 = vmatprep.subr.mxu0 %v43
    %108 = vmatpush1.msra.mxu0 %v42
    %109 = vmatprep.subr.mxu0 %v45
    %110 = vmatpush1.msra.mxu0 %v44
    %111 = vmatprep.subr.mxu0 %v47
    %112 = vmatpush1.msra.mxu0 %v46
    %113 = vmatprep.subr.mxu0 %v49
    %114 = vmatpush1.msra.mxu0 %v48
    %115 = vmatprep.subr.mxu0 %v51
    %116 = vmatpush1.msra.mxu0 %v50
    %117 = vmatprep.subr.mxu0 %v53
    %118 = vmatpush1.msra.mxu0 %v52
    %119 = vmatprep.subr.mxu0 %v55
    %120 = vmatpush1.msra.mxu0 %v54
    %121 = vmatprep.subr.mxu0 %v57
    %122 = vmatpush1.msra.mxu0 %v56
    %123 = vmatprep.subr.mxu0 %v59
    %124 = vmatpush1.msra.mxu0 %v58
    %125 = vmatprep.subr.mxu0 %v61
    %126 = vmatpush1.msra.mxu0 %v60
    %127 = vmatprep.subr.mxu0 %v63
    %128 = vmatpush1.msra.mxu0 %v62
    %129 = vmatprep.subr.mxu0 %v65
    %130 = vmatpush1.msra.mxu0 %v64
    %131 = vmatprep.subr.mxu0 %v67
    %132 = vmatpush1.msra.mxu0 %v66
    %133 = vmatprep.subr.mxu0 %v69
    %134 = vmatpush1.msra.mxu0 %v68
    %135 = vmatprep.subr.mxu0 %v71
    %136 = vmatpush1.msra.mxu0 %v70
    %137 = vmatprep.subr.mxu0 %v73
    %138 = vmatpush1.msra.mxu0 %v72
    %139 = vmatprep.subr.mxu0 %v75
    %140 = vmatpush1.msra.mxu0 %v74
    %141 = vmatprep.subr.mxu0 %v77
    %142 = vmatpush1.msra.mxu0 %v76
    %143 = vmatprep.subr.mxu0 %v79
    %144 = vmatpush1.msra.mxu0 %v78
    %145 = vmatprep.subr.mxu0 %v81
    %146 = vmatpush1.msra.mxu0 %v80
    %147 = vmatprep.subr.mxu0 %v83
    %148 = vmatpush1.msra.mxu0 %v82
    %149 = vmatprep.subr.mxu0 0.0
    %150 = vmatpush1.msra.mxu0 0.0
    %151 = vmatprep.subr.mxu0 0.0
    %152 = vmatpush1.msra.mxu0 0.0
    %153 = vmatprep.subr.mxu0 0.0
    %154 = vmatpush1.msra.mxu0 0.0
    %155 = vmatprep.subr.mxu0 0.0
    %156 = vmatpush1.msra.mxu0 0.0
    %157 = vmatprep.subr.mxu0 0.0
    %158 = vmatpush1.msra.mxu0 0.0
    %159 = vmatprep.subr.mxu0 0.0
    %160 = vmatpush1.msra.mxu0 0.0
    %161 = vmatprep.subr.mxu0 0.0
    %162 = vmatpush1.msra.mxu0 0.0
    %163 = vmatprep.subr.mxu0 0.0
    %164 = vmatpush1.msra.mxu0 0.0
    %165 = vmatprep.mubr.f32.mxu0 %v99
    %166 = vmatmul.mubr.f32.gmra.mrb[0].mxu0 %v35
    %v167 = vpop.f32.mrb[0].mxu0
    %v168 = vadd.f32 %v89, %v167
    %v169 = vpop.f32.mrb[0].mxu0
    %v170 = vadd.f32 %v93, %v169
    %171 = vdwg.mxu0
    %v172 = vld [vmem:[%s1] sm:$0x3f]
    %v173 = vld [vmem:[%s1 + $0x8] sm:$0x3f]
    %s174 = scalar_lea.vmem [#allocation2], 384
    %v175 = vld [vmem:[%s174] sm:$0xff]
    %v176 = vld [vmem:[%s174 + $0x8] sm:$0xff]
    %v177 = vld [vmem:[%s174 + $0x10] sm:$0xff]
    %v178 = vld [vmem:[%s174 + $0x18] sm:$0xff]
    %v179 = vld [vmem:[%s174 + $0x20] sm:$0xff]
    %v180 = vld [vmem:[%s174 + $0x28] sm:$0xff]
    %v181 = vld [vmem:[%s174 + $0x30] sm:$0xff]
    %v182 = vld [vmem:[%s174 + $0x38] sm:$0xff]
    %v183 = vld [vmem:[%s174 + $0x40] sm:$0xff]
    %v184 = vld [vmem:[%s174 + $0x48] sm:$0xff]
    %v185 = vld [vmem:[%s174 + $0x50] sm:$0xff]
    %v186 = vld [vmem:[%s174 + $0x58] sm:$0xff]
    %v187 = vld [vmem:[%s174 + $0x60] sm:$0xff]
    %v188 = vld [vmem:[%s174 + $0x68] sm:$0xff]
    %v189 = vld [vmem:[%s174 + $0x70] sm:$0xff]
    %v190 = vld [vmem:[%s174 + $0x78] sm:$0xff]
    %v191 = vld [vmem:[%s174 + $0x80] sm:$0xff]
    %v192 = vld [vmem:[%s174 + $0x88] sm:$0xff]
    %v193 = vld [vmem:[%s174 + $0x90] sm:$0xff]
    %v194 = vld [vmem:[%s174 + $0x98] sm:$0xff]
    %v195 = vld [vmem:[%s174 + $0xa0] sm:$0xff]
    %v196 = vld [vmem:[%s174 + $0xa8] sm:$0xff]
    %v197 = vld [vmem:[%s174 + $0xb0] sm:$0xff]
    %v198 = vld [vmem:[%s174 + $0xb8] sm:$0xff]
    %v199 = vld [vmem:[%s174 + $0xc0] sm:$0xff]
    %v200 = vld [vmem:[%s174 + $0xc8] sm:$0xff]
    %v201 = vld [vmem:[%s174 + $0xd0] sm:$0xff]
    %v202 = vld [vmem:[%s174 + $0xd8] sm:$0xff]
    %v203 = vld [vmem:[%s174 + $0xe0] sm:$0xff]
    %v204 = vld [vmem:[%s174 + $0xe8] sm:$0xff]
    %v205 = vld [vmem:[%s174 + $0xf0] sm:$0xff]
    %v206 = vld [vmem:[%s174 + $0xf8] sm:$0xff]
    %v207 = vld [vmem:[%s174 + $0x100] sm:$0xff]
    %v208 = vld [vmem:[%s174 + $0x108] sm:$0xff]
    %v209 = vld [vmem:[%s174 + $0x110] sm:$0xff]
    %v210 = vld [vmem:[%s174 + $0x118] sm:$0xff]
    %v211 = vld [vmem:[%s174 + $0x120] sm:$0xff]
    %v212 = vld [vmem:[%s174 + $0x128] sm:$0xff]
    %v213 = vld [vmem:[%s174 + $0x130] sm:$0xff]
    %v214 = vld [vmem:[%s174 + $0x138] sm:$0xff]
    %v215 = vld [vmem:[%s174 + $0x140] sm:$0xff]
    %v216 = vld [vmem:[%s174 + $0x148] sm:$0xff]
    %v217 = vld [vmem:[%s174 + $0x150] sm:$0xff]
    %v218 = vld [vmem:[%s174 + $0x158] sm:$0xff]
    %v219 = vld [vmem:[%s174 + $0x160] sm:$0xff]
    %v220 = vld [vmem:[%s174 + $0x168] sm:$0xff]
    %v221 = vld [vmem:[%s174 + $0x170] sm:$0xff]
    %v222 = vld [vmem:[%s174 + $0x178] sm:$0xff]
    %s223 = scalar_lea.vmem %s4, 2
    %v224 = vld [vmem:[%s223] sm:$0x3]
    %v226 = vlaneseq
    %v227 = vshrl.u32 %v226, 7
    %v228 = vsub.s32 0, %v227
    %v229 = vrot.slane %v224, %v228
    %v230 = vlaneseq
    %v231 = vshrl.u32 %v230, 7
    %v232 = vsub.s32 1, %v231
    %v233 = vrot.slane %v224, %v232
    %v237 = vsel %vm98, %v173, 0
    %239 = vmatprep.subr.mxu0 %v176
    %240 = vmatpush1.msra.mxu0 %v175
    %241 = vmatprep.subr.mxu0 %v178
    %242 = vmatpush1.msra.mxu0 %v177
    %243 = vmatprep.subr.mxu0 %v180
    %244 = vmatpush1.msra.mxu0 %v179
    %245 = vmatprep.subr.mxu0 %v182
    %246 = vmatpush1.msra.mxu0 %v181
    %247 = vmatprep.subr.mxu0 %v184
    %248 = vmatpush1.msra.mxu0 %v183
    %249 = vmatprep.subr.mxu0 %v186
    %250 = vmatpush1.msra.mxu0 %v185
    %251 = vmatprep.subr.mxu0 %v188
    %252 = vmatpush1.msra.mxu0 %v187
    %253 = vmatprep.subr.mxu0 %v190
    %254 = vmatpush1.msra.mxu0 %v189
    %255 = vmatprep.subr.mxu0 %v192
    %256 = vmatpush1.msra.mxu0 %v191
    %257 = vmatprep.subr.mxu0 %v194
    %258 = vmatpush1.msra.mxu0 %v193
    %259 = vmatprep.subr.mxu0 %v196
    %260 = vmatpush1.msra.mxu0 %v195
    %261 = vmatprep.subr.mxu0 %v198
    %262 = vmatpush1.msra.mxu0 %v197
    %263 = vmatprep.subr.mxu0 %v200
    %264 = vmatpush1.msra.mxu0 %v199
    %265 = vmatprep.subr.mxu0 %v202
    %266 = vmatpush1.msra.mxu0 %v201
    %267 = vmatprep.subr.mxu0 %v204
    %268 = vmatpush1.msra.mxu0 %v203
    %269 = vmatprep.subr.mxu0 %v206
    %270 = vmatpush1.msra.mxu0 %v205
    %271 = vmatprep.subr.mxu0 %v208
    %272 = vmatpush1.msra.mxu0 %v207
    %273 = vmatprep.subr.mxu0 %v210
    %274 = vmatpush1.msra.mxu0 %v209
    %275 = vmatprep.subr.mxu0 %v212
    %276 = vmatpush1.msra.mxu0 %v211
    %277 = vmatprep.subr.mxu0 %v214
    %278 = vmatpush1.msra.mxu0 %v213
    %279 = vmatprep.subr.mxu0 %v216
    %280 = vmatpush1.msra.mxu0 %v215
    %281 = vmatprep.subr.mxu0 %v218
    %282 = vmatpush1.msra.mxu0 %v217
    %283 = vmatprep.subr.mxu0 %v220
    %284 = vmatpush1.msra.mxu0 %v219
    %285 = vmatprep.subr.mxu0 %v222
    %286 = vmatpush1.msra.mxu0 %v221
    %287 = vmatprep.subr.mxu0 0.0
    %288 = vmatpush1.msra.mxu0 0.0
    %289 = vmatprep.subr.mxu0 0.0
    %290 = vmatpush1.msra.mxu0 0.0
    %291 = vmatprep.subr.mxu0 0.0
    %292 = vmatpush1.msra.mxu0 0.0
    %293 = vmatprep.subr.mxu0 0.0
    %294 = vmatpush1.msra.mxu0 0.0
    %295 = vmatprep.subr.mxu0 0.0
    %296 = vmatpush1.msra.mxu0 0.0
    %297 = vmatprep.subr.mxu0 0.0
    %298 = vmatpush1.msra.mxu0 0.0
    %299 = vmatprep.subr.mxu0 0.0
    %300 = vmatpush1.msra.mxu0 0.0
    %301 = vmatprep.subr.mxu0 0.0
    %302 = vmatpush1.msra.mxu0 0.0
    %303 = vmatprep.mubr.f32.mxu0 %v237
    %304 = vmatmul.mubr.f32.gmra.mrb[0].mxu0 %v172
    %v305 = vpop.f32.mrb[0].mxu0
    %v306 = vadd.f32 %v229, %v305
    %v307 = vpop.f32.mrb[0].mxu0
    %v308 = vadd.f32 %v233, %v307
    %309 = vdwg.mxu0
    %v310 = vld [vmem:[%s2] sm:$0x3f]
    %v311 = vld [vmem:[%s2 + $0x8] sm:$0x3f]
    %s312 = scalar_lea.vmem [#allocation2], 768
    %v313 = vld [vmem:[%s312] sm:$0xff]
    %v314 = vld [vmem:[%s312 + $0x8] sm:$0xff]
    %v315 = vld [vmem:[%s312 + $0x10] sm:$0xff]
    %v316 = vld [vmem:[%s312 + $0x18] sm:$0xff]
    %v317 = vld [vmem:[%s312 + $0x20] sm:$0xff]
    %v318 = vld [vmem:[%s312 + $0x28] sm:$0xff]
    %v319 = vld [vmem:[%s312 + $0x30] sm:$0xff]
    %v320 = vld [vmem:[%s312 + $0x38] sm:$0xff]
    %v321 = vld [vmem:[%s312 + $0x40] sm:$0xff]
    %v322 = vld [vmem:[%s312 + $0x48] sm:$0xff]
    %v323 = vld [vmem:[%s312 + $0x50] sm:$0xff]
    %v324 = vld [vmem:[%s312 + $0x58] sm:$0xff]
    %v325 = vld [vmem:[%s312 + $0x60] sm:$0xff]
    %v326 = vld [vmem:[%s312 + $0x68] sm:$0xff]
    %v327 = vld [vmem:[%s312 + $0x70] sm:$0xff]
    %v328 = vld [vmem:[%s312 + $0x78] sm:$0xff]
    %v329 = vld [vmem:[%s312 + $0x80] sm:$0xff]
    %v330 = vld [vmem:[%s312 + $0x88] sm:$0xff]
    %v331 = vld [vmem:[%s312 + $0x90] sm:$0xff]
    %v332 = vld [vmem:[%s312 + $0x98] sm:$0xff]
    %v333 = vld [vmem:[%s312 + $0xa0] sm:$0xff]
    %v334 = vld [vmem:[%s312 + $0xa8] sm:$0xff]
    %v335 = vld [vmem:[%s312 + $0xb0] sm:$0xff]
    %v336 = vld [vmem:[%s312 + $0xb8] sm:$0xff]
    %v337 = vld [vmem:[%s312 + $0xc0] sm:$0xff]
    %v338 = vld [vmem:[%s312 + $0xc8] sm:$0xff]
    %v339 = vld [vmem:[%s312 + $0xd0] sm:$0xff]
    %v340 = vld [vmem:[%s312 + $0xd8] sm:$0xff]
    %v341 = vld [vmem:[%s312 + $0xe0] sm:$0xff]
    %v342 = vld [vmem:[%s312 + $0xe8] sm:$0xff]
    %v343 = vld [vmem:[%s312 + $0xf0] sm:$0xff]
    %v344 = vld [vmem:[%s312 + $0xf8] sm:$0xff]
    %v345 = vld [vmem:[%s312 + $0x100] sm:$0xff]
    %v346 = vld [vmem:[%s312 + $0x108] sm:$0xff]
    %v347 = vld [vmem:[%s312 + $0x110] sm:$0xff]
    %v348 = vld [vmem:[%s312 + $0x118] sm:$0xff]
    %v349 = vld [vmem:[%s312 + $0x120] sm:$0xff]
    %v350 = vld [vmem:[%s312 + $0x128] sm:$0xff]
    %v351 = vld [vmem:[%s312 + $0x130] sm:$0xff]
    %v352 = vld [vmem:[%s312 + $0x138] sm:$0xff]
    %v353 = vld [vmem:[%s312 + $0x140] sm:$0xff]
    %v354 = vld [vmem:[%s312 + $0x148] sm:$0xff]
    %v355 = vld [vmem:[%s312 + $0x150] sm:$0xff]
    %v356 = vld [vmem:[%s312 + $0x158] sm:$0xff]
    %v357 = vld [vmem:[%s312 + $0x160] sm:$0xff]
    %v358 = vld [vmem:[%s312 + $0x168] sm:$0xff]
    %v359 = vld [vmem:[%s312 + $0x170] sm:$0xff]
    %v360 = vld [vmem:[%s312 + $0x178] sm:$0xff]
    %s361 = scalar_lea.vmem %s4, 4
    %v362 = vld [vmem:[%s361] sm:$0x3]
    %v364 = vlaneseq
    %v365 = vshrl.u32 %v364, 7
    %v366 = vsub.s32 0, %v365
    %v367 = vrot.slane %v362, %v366
    %v368 = vlaneseq
    %v369 = vshrl.u32 %v368, 7
    %v370 = vsub.s32 1, %v369
    %v371 = vrot.slane %v362, %v370
    %v375 = vsel %vm98, %v311, 0
    %377 = vmatprep.subr.mxu0 %v314
    %378 = vmatpush1.msra.mxu0 %v313
    %379 = vmatprep.subr.mxu0 %v316
    %380 = vmatpush1.msra.mxu0 %v315
    %381 = vmatprep.subr.mxu0 %v318
    %382 = vmatpush1.msra.mxu0 %v317
    %383 = vmatprep.subr.mxu0 %v320
    %384 = vmatpush1.msra.mxu0 %v319
    %385 = vmatprep.subr.mxu0 %v322
    %386 = vmatpush1.msra.mxu0 %v321
    %387 = vmatprep.subr.mxu0 %v324
    %388 = vmatpush1.msra.mxu0 %v323
    %389 = vmatprep.subr.mxu0 %v326
    %390 = vmatpush1.msra.mxu0 %v325
    %391 = vmatprep.subr.mxu0 %v328
    %392 = vmatpush1.msra.mxu0 %v327
    %393 = vmatprep.subr.mxu0 %v330
    %394 = vmatpush1.msra.mxu0 %v329
    %395 = vmatprep.subr.mxu0 %v332
    %396 = vmatpush1.msra.mxu0 %v331
    %397 = vmatprep.subr.mxu0 %v334
    %398 = vmatpush1.msra.mxu0 %v333
    %399 = vmatprep.subr.mxu0 %v336
    %400 = vmatpush1.msra.mxu0 %v335
    %401 = vmatprep.subr.mxu0 %v338
    %402 = vmatpush1.msra.mxu0 %v337
    %403 = vmatprep.subr.mxu0 %v340
    %404 = vmatpush1.msra.mxu0 %v339
    %405 = vmatprep.subr.mxu0 %v342
    %406 = vmatpush1.msra.mxu0 %v341
    %407 = vmatprep.subr.mxu0 %v344
    %408 = vmatpush1.msra.mxu0 %v343
    %409 = vmatprep.subr.mxu0 %v346
    %410 = vmatpush1.msra.mxu0 %v345
    %411 = vmatprep.subr.mxu0 %v348
    %412 = vmatpush1.msra.mxu0 %v347
    %413 = vmatprep.subr.mxu0 %v350
    %414 = vmatpush1.msra.mxu0 %v349
    %415 = vmatprep.subr.mxu0 %v352
    %416 = vmatpush1.msra.mxu0 %v351
    %417 = vmatprep.subr.mxu0 %v354
    %418 = vmatpush1.msra.mxu0 %v353
    %419 = vmatprep.subr.mxu0 %v356
    %420 = vmatpush1.msra.mxu0 %v355
    %421 = vmatprep.subr.mxu0 %v358
    %422 = vmatpush1.msra.mxu0 %v357
    %423 = vmatprep.subr.mxu0 %v360
    %424 = vmatpush1.msra.mxu0 %v359
    %425 = vmatprep.subr.mxu0 0.0
    %426 = vmatpush1.msra.mxu0 0.0
    %427 = vmatprep.subr.mxu0 0.0
    %428 = vmatpush1.msra.mxu0 0.0
    %429 = vmatprep.subr.mxu0 0.0
    %430 = vmatpush1.msra.mxu0 0.0
    %431 = vmatprep.subr.mxu0 0.0
    %432 = vmatpush1.msra.mxu0 0.0
    %433 = vmatprep.subr.mxu0 0.0
    %434 = vmatpush1.msra.mxu0 0.0
    %435 = vmatprep.subr.mxu0 0.0
    %436 = vmatpush1.msra.mxu0 0.0
    %437 = vmatprep.subr.mxu0 0.0
    %438 = vmatpush1.msra.mxu0 0.0
    %439 = vmatprep.subr.mxu0 0.0
    %440 = vmatpush1.msra.mxu0 0.0
    %441 = vmatprep.mubr.f32.mxu0 %v375
    %442 = vmatmul.mubr.f32.gmra.mrb[0].mxu0 %v310
    %v443 = vpop.f32.mrb[0].mxu0
    %v444 = vadd.f32 %v367, %v443
    %v445 = vpop.f32.mrb[0].mxu0
    %v446 = vadd.f32 %v371, %v445
    %447 = vdwg.mxu0
    %v449 = vsel %vm98, %v170, 0
    %v452 = vsel %vm98, %v308, 0
    %454 = vmatprep.subr.mxu0 %v452
    %455 = vmatpush1.xpose.msra.mxu0 %v306
    %456 = vmatprep.subr.mxu0 0.0
    %457 = vmatpush1.xpose.msra.mxu0 0.0
    %458 = vmatprep.subr.mxu0 0.0
    %459 = vmatpush1.xpose.msra.mxu0 0.0
    %460 = vmatprep.subr.mxu0 0.0
    %461 = vmatpush1.xpose.msra.mxu0 0.0
    %462 = vmatprep.subr.mxu0 0.0
    %463 = vmatpush1.xpose.msra.mxu0 0.0
    %464 = vmatprep.subr.mxu0 0.0
    %465 = vmatpush1.xpose.msra.mxu0 0.0
    %466 = vmatprep.subr.mxu0 0.0
    %467 = vmatpush1.xpose.msra.mxu0 0.0
    %468 = vmatprep.subr.mxu0 0.0
    %469 = vmatpush1.xpose.msra.mxu0 0.0
    %470 = vmatprep.subr.mxu0 0.0
    %471 = vmatpush1.xpose.msra.mxu0 0.0
    %472 = vmatprep.subr.mxu0 0.0
    %473 = vmatpush1.xpose.msra.mxu0 0.0
    %474 = vmatprep.subr.mxu0 0.0
    %475 = vmatpush1.xpose.msra.mxu0 0.0
    %476 = vmatprep.subr.mxu0 0.0
    %477 = vmatpush1.xpose.msra.mxu0 0.0
    %478 = vmatprep.subr.mxu0 0.0
    %479 = vmatpush1.xpose.msra.mxu0 0.0
    %480 = vmatprep.subr.mxu0 0.0
    %481 = vmatpush1.xpose.msra.mxu0 0.0
    %482 = vmatprep.subr.mxu0 0.0
    %483 = vmatpush1.xpose.msra.mxu0 0.0
    %484 = vmatprep.subr.mxu0 0.0
    %485 = vmatpush1.xpose.msra.mxu0 0.0
    %486 = vmatprep.subr.mxu0 0.0
    %487 = vmatpush1.xpose.msra.mxu0 0.0
    %488 = vmatprep.subr.mxu0 0.0
    %489 = vmatpush1.xpose.msra.mxu0 0.0
    %490 = vmatprep.subr.mxu0 0.0
    %491 = vmatpush1.xpose.msra.mxu0 0.0
    %492 = vmatprep.subr.mxu0 0.0
    %493 = vmatpush1.xpose.msra.mxu0 0.0
    %494 = vmatprep.subr.mxu0 0.0
    %495 = vmatpush1.xpose.msra.mxu0 0.0
    %496 = vmatprep.subr.mxu0 0.0
    %497 = vmatpush1.xpose.msra.mxu0 0.0
    %498 = vmatprep.subr.mxu0 0.0
    %499 = vmatpush1.xpose.msra.mxu0 0.0
    %500 = vmatprep.subr.mxu0 0.0
    %501 = vmatpush1.xpose.msra.mxu0 0.0
    %502 = vmatprep.subr.mxu0 0.0
    %503 = vmatpush1.xpose.msra.mxu0 0.0
    %504 = vmatprep.subr.mxu0 0.0
    %505 = vmatpush1.xpose.msra.mxu0 0.0
    %506 = vmatprep.subr.mxu0 0.0
    %507 = vmatpush1.xpose.msra.mxu0 0.0
    %508 = vmatprep.subr.mxu0 0.0
    %509 = vmatpush1.xpose.msra.mxu0 0.0
    %510 = vmatprep.subr.mxu0 0.0
    %511 = vmatpush1.xpose.msra.mxu0 0.0
    %512 = vmatprep.subr.mxu0 0.0
    %513 = vmatpush1.xpose.msra.mxu0 0.0
    %514 = vmatprep.subr.mxu0 0.0
    %515 = vmatpush1.xpose.msra.mxu0 0.0
    %516 = vmatprep.subr.mxu0 0.0
    %517 = vmatpush1.xpose.msra.mxu0 0.0
    %518 = vmatprep.mubr.f32.mxu0 %v449
    %519 = vmatmul.mubr.f32.gmra.mrb[0].mxu0 %v168
    %v520 = vpop.f32.mrb[0].mxu0
    %v521 = vadd.f32 0.0, %v520
    %v522 = vpop.f32.mrb[0].mxu0
    %523 = vdwg.mxu0
    %vm524 = vcmask 44032
    %v525 = vsel %vm524, %v521, -inf
    %526 = vmax.xlane.f32.xlu0 %v525
    %v527 = vpop.xlane.xlu0 %526
    %v528 = vsub.f32 %v521, %v527
    %v529 = vmul.f32 %v528, 1.442695
    %v530 = vpow.pop %v529
    %v531 = vsel %vm524, %v530, 0.0
    %532 = vadd.xlane.f32.xlu0 %v531
    %v533 = vpop.xlane.xlu0 %532
    %vm534 = vcmask 48128
    %v536 = vsel %vm534, %v530, 0
    %vm538 = vcmask 1045504
    %v540 = vsel %vm538, %v444, 0
    %v543 = vsel %vm538, %v446, 0
    %545 = vmatprep.subr.mxu0 %v543
    %546 = vmatpush1.msra.mxu0 %v540
    %547 = vmatprep.subr.mxu0 0.0
    %548 = vmatpush1.msra.mxu0 0.0
    %549 = vmatprep.subr.mxu0 0.0
    %550 = vmatpush1.msra.mxu0 0.0
    %551 = vmatprep.subr.mxu0 0.0
    %552 = vmatpush1.msra.mxu0 0.0
    %553 = vmatprep.subr.mxu0 0.0
    %554 = vmatpush1.msra.mxu0 0.0
    %555 = vmatprep.subr.mxu0 0.0
    %556 = vmatpush1.msra.mxu0 0.0
    %557 = vmatprep.subr.mxu0 0.0
    %558 = vmatpush1.msra.mxu0 0.0
    %559 = vmatprep.subr.mxu0 0.0
    %560 = vmatpush1.msra.mxu0 0.0
    %561 = vmatprep.subr.mxu0 0.0
    %562 = vmatpush1.msra.mxu0 0.0
    %563 = vmatprep.subr.mxu0 0.0
    %564 = vmatpush1.msra.mxu0 0.0
    %565 = vmatprep.subr.mxu0 0.0
    %566 = vmatpush1.msra.mxu0 0.0
    %567 = vmatprep.subr.mxu0 0.0
    %568 = vmatpush1.msra.mxu0 0.0
    %569 = vmatprep.subr.mxu0 0.0
    %570 = vmatpush1.msra.mxu0 0.0
    %571 = vmatprep.subr.mxu0 0.0
    %572 = vmatpush1.msra.mxu0 0.0
    %573 = vmatprep.subr.mxu0 0.0
    %574 = vmatpush1.msra.mxu0 0.0
    %575 = vmatprep.subr.mxu0 0.0
    %576 = vmatpush1.msra.mxu0 0.0
    %577 = vmatprep.subr.mxu0 0.0
    %578 = vmatpush1.msra.mxu0 0.0
    %579 = vmatprep.subr.mxu0 0.0
    %580 = vmatpush1.msra.mxu0 0.0
    %581 = vmatprep.subr.mxu0 0.0
    %582 = vmatpush1.msra.mxu0 0.0
    %583 = vmatprep.subr.mxu0 0.0
    %584 = vmatpush1.msra.mxu0 0.0
    %585 = vmatprep.subr.mxu0 0.0
    %586 = vmatpush1.msra.mxu0 0.0
    %587 = vmatprep.subr.mxu0 0.0
    %588 = vmatpush1.msra.mxu0 0.0
    %589 = vmatprep.subr.mxu0 0.0
    %590 = vmatpush1.msra.mxu0 0.0
    %591 = vmatprep.subr.mxu0 0.0
    %592 = vmatpush1.msra.mxu0 0.0
    %593 = vmatprep.subr.mxu0 0.0
    %594 = vmatpush1.msra.mxu0 0.0
    %595 = vmatprep.subr.mxu0 0.0
    %596 = vmatpush1.msra.mxu0 0.0
    %597 = vmatprep.subr.mxu0 0.0
    %598 = vmatpush1.msra.mxu0 0.0
    %599 = vmatprep.subr.mxu0 0.0
    %600 = vmatpush1.msra.mxu0 0.0
    %601 = vmatprep.subr.mxu0 0.0
    %602 = vmatpush1.msra.mxu0 0.0
    %603 = vmatprep.subr.mxu0 0.0
    %604 = vmatpush1.msra.mxu0 0.0
    %605 = vmatprep.subr.mxu0 0.0
    %606 = vmatpush1.msra.mxu0 0.0
    %607 = vmatprep.subr.mxu0 0.0
    %608 = vmatpush1.msra.mxu0 0.0
    %609 = vmatprep.mubr.f32.mxu0 0.0
    %610 = vmatmul.mubr.f32.gmra.mrb[0].mxu0 %v536
    %v611 = vpop.f32.mrb[0].mxu0
    %v612 = vadd.f32 0.0, %v611
    %v613 = vpop.f32.mrb[0].mxu0
    %v614 = vadd.f32 0.0, %v613
    %615 = vdwg.mxu0
    %v616 = vrcp.pop %v533
    %v617 = vmul.f32 %v612, %v616
    %v618 = vmul.f32 %v614, %v616
    %v621 = vcombine.low %v617, %v618
    %vm623 = vcmask 1043456
    %vm624 = vcmask 523268
    %vm625 = vmor %vm624, %vm623
    %626 = vst.msk [vmem:[#allocation5] sm:$0xff] %vm625, %v621
    // Predicated region
    $region26: #{attention_forward.1} parent=1 // pred_check
      _
    $region27: #{attention_forward.1} parent=1 // pred_check_branch
      %628 = sbr.rel (0) target = $region29
    $region28: #{attention_forward.1} parent=1 // pred_region
      %s630 = ssub.s32 128, 128
      %631 = vsyncadd [#allocation4], %s630
      %s633 = sshll.u32 [#allocation5], 4
      %s634 = int_to_ptr.vmem [resolvable:$true] %s633
      %636 = dma.vmem_to_hbm [thread:$0]  %s634, 128, %s5, [#allocation4]
    $region29: #{attention_forward.1} parent=1 // pred_fallthru
      _
    // Predicated region
    $region30: #{attention_forward.1} parent=1 // pred_check
      _
    $region31: #{attention_forward.1} parent=1 // pred_check_branch
      %638 = sbr.rel (0) target = $region33
    $region32: #{attention_forward.1} parent=1 // pred_region
      %639 = dma.done [#allocation4], 128
    $region33: #{attention_forward.1} parent=1 // pred_fallthru
      _
    %640 = vsyncpa [#allocation3], 1
    %641 = vsyncpa [#allocation4], 1

</llo_original>
